<compile_context>
chip_gen: v7x
topology: tpu7x:2x2x1
jax: 0.10.0
libtpu: 0.0.40
codegen_flags: <defaults>
</compile_context>

<pallas_src>
import jax
import jax.numpy as jnp
from jax.experimental import pallas as pl
from jax.experimental.pallas import tpu as pltpu


_LANE = 1024  # lane-dense column width (multiple of 128)
_TM = 512     # row tile: 512x1024 f32 = 2 MiB / tile


def _round_up(n, m):
    return ((n + m - 1) // m) * m


def _scale_kernel(scale_ref, x_ref, o_ref):
    # scale_ref: (1,) f32 scalar in SMEM (kept f32 so bf16/fp8 inputs don't
    #            quantize the learnable parameter before the multiply).
    # x_ref / o_ref: (tm, lane) tiles in VMEM.
    s = scale_ref[0]
    o_ref[...] = (x_ref[...].astype(jnp.float32) * s).astype(o_ref.dtype)


def scale_forward(x, scale):
    """Elementwise `x * scale`; `scale` is the learnable scalar (shape (1,))."""
    orig_shape = x.shape
    total = int(x.size)

    # ---- lane-dense 2-D layout, independent of the NCHW dims -----------------
    if total >= _LANE:
        lane = _LANE
    else:
        lane = max(128, _round_up(total, 128))  # tiny input: one padded strip

    rows_needed = -(-total // lane)
    if rows_needed >= _TM:
        tm = _TM
        rows = _round_up(rows_needed, tm)       # full grid of equal tiles
    else:
        tm = _round_up(rows_needed, 8)          # single sublane-aligned tile
        rows = tm

    padded = rows * lane
    flat = x.reshape(-1)
    if padded != total:
        flat = jnp.pad(flat, (0, padded - total))
    x2d = flat.reshape(rows, lane)

    scale_f32 = jnp.asarray(scale, dtype=jnp.float32).reshape(1)

    grid = (rows // tm,)
    itemsize = jnp.dtype(x.dtype).itemsize

    out2d = pl.pallas_call(
        _scale_kernel,
        out_shape=jax.ShapeDtypeStruct((rows, lane), x.dtype),
        grid=grid,
        in_specs=[
            pl.BlockSpec(memory_space=pltpu.SMEM),        # scalar parameter
            pl.BlockSpec((tm, lane), lambda i: (i, 0)),   # streaming input tiles
        ],
        out_specs=pl.BlockSpec((tm, lane), lambda i: (i, 0)),
        compiler_params=pltpu.CompilerParams(
            dimension_semantics=("parallel",),            # megacore split on v7x
        ),
        cost_estimate=pl.CostEstimate(
            flops=total,
            transcendentals=0,
            bytes_accessed=2 * total * itemsize,
        ),
    )(scale_f32, x2d)

    return out2d.reshape(-1)[:total].reshape(orig_shape)


if __name__ == "__main__":
    key = jax.random.PRNGKey(0)
    # NCHW input, small shapes
    x = jax.random.normal(key, (2, 4, 16, 16), dtype=jnp.float32)

    # Deterministic parameter init, matching nn.Parameter(torch.FloatTensor([0.001]))
    init_value = 0.001
    scale_param = jnp.array([init_value], dtype=jnp.float32)

    out = scale_forward(x, scale_param)
    out = jax.block_until_ready(out)

    # Sanity check against the trivial reference
    ref = x * init_value
    assert out.shape == x.shape
    assert jnp.allclose(out, ref, atol=1e-6), "mismatch vs reference"

    print("KERNEL_OK")
</pallas_src>

<mosaic_0001>
module attributes {stable_mosaic.version = 11 : i64} {
  func.func @_scale_kernel(%arg0: i32, %arg1: memref<1xf32, #tpu.memory_space<smem>>, %arg2: memref<8x1024xf32, #tpu.memory_space<vmem>>, %arg3: memref<8x1024xf32, #tpu.memory_space<vmem>>) attributes {dimension_semantics = [#tpu.dimension_semantics<parallel>], iteration_bounds = array<i64: 1>, scalar_prefetch = 0 : i64, scratch_operands = 0 : i64, tpu.core_type = #tpu.core_type<tc>, window_params = [{transform_indices = @transform_0, window_bounds = array<i64: 1>}, {transform_indices = @transform_1, window_bounds = array<i64: 8, 1024>}, {transform_indices = @transform_2, window_bounds = array<i64: 8, 1024>}]} {
    %c0 = arith.constant 0 : index
    %0 = memref.load %arg1[%c0] : memref<1xf32, #tpu.memory_space<smem>>
    %c0_0 = arith.constant 0 : index
    %c0_1 = arith.constant 0 : index
    %1 = vector.load %arg2[%c0_0, %c0_1] : memref<8x1024xf32, #tpu.memory_space<vmem>>, vector<8x1024xf32>
    %2 = vector.broadcast %0 : f32 to vector<8x1024xf32>
    %3 = arith.mulf %1, %2 : vector<8x1024xf32>
    %c0_2 = arith.constant 0 : index
    %c0_3 = arith.constant 0 : index
    %4 = vector.load %arg3[%c0_2, %c0_3] : memref<8x1024xf32, #tpu.memory_space<vmem>>, vector<8x1024xf32>
    tpu.vector_store %arg3[%c0_2, %c0_3], %3 {strides = array<i32>} : memref<8x1024xf32, #tpu.memory_space<vmem>>, vector<8x1024xf32>,
    return
  }
  func.func @transform_0(%arg0: i32) -> i32 {
    %c0_i32 = arith.constant 0 : i32
    %c0_i32_0 = arith.constant 0 : i32
    return %c0_i32 : i32
  }
  func.func @transform_1(%arg0: i32) -> (i32, i32) {
    %c0_i32 = arith.constant 0 : i32
    %c0_i32_0 = arith.constant 0 : i32
    return %arg0, %c0_i32 : i32, i32
  }
  func.func @transform_2(%arg0: i32) -> (i32, i32) {
    %c0_i32 = arith.constant 0 : i32
    %c0_i32_0 = arith.constant 0 : i32
    return %arg0, %c0_i32 : i32, i32
  }
}

</mosaic_0001>

<llo_original>
// kernel: tpu_custom_call.1
$region0: #{tpu_custom_call.1}
  #allocation0 [shape = 'u32[]', space=smem, size = 0x4, offset = 0x4, fixed_abs, tag = 'smem constant byte address 0x4 - core index']
  #allocation1 [shape = 'u32[144,128]{1,0:T(1,128)}', space=vmem, size = 0x12000, scoped, tag = 'internal scratch']
  #allocation2 [shape = 'f32[1]{0:T(128)S(6)}', space=smem, size = 0x200, scoped, tag = 'scoped memory for tpu_custom_call.1']
  %s0 = inlined_call_operand.<no memory space> [shape: f32[1], index: 0, kind: input, shape index: {}]
  %s1 = inlined_call_operand.hbm [shape: f32[8,1024], index: 1, kind: input, shape index: {}]
  %s2 = inlined_call_operand.hbm [shape: f32[8,1024], index: 2, kind: output, shape index: {}]
  %s3 = sld [smem:[#allocation0]]
  $region22: #{tpu_custom_call.1} parent=0
    _
  %s5 = ssub.s32 1, %s3
  %s6 = scalar_select 0, %s5, %s3
  %7 = sst [smem:[#allocation2]] %s0
  $region1: #{tpu_custom_call.1} parent=0
    #allocation3 [shape = 'u8[32768]{0}', space=vmem, size = 0x8000, scoped, tag = 'input window, operand 1, single buffered']
    #allocation4 [shape = 's32[1]{0}', space=sflag, size = 0x4, scoped, tag = 'scoped memory for tpu_custom_call.1']
    #allocation5 [shape = 's32[1]{0}', space=sflag, size = 0x4, scoped, tag = 'scoped memory for tpu_custom_call.1']
    #allocation6 [shape = 'u8[32768]{0}', space=vmem, size = 0x8000, scoped, tag = 'output window, operand 0, single buffered']
    %8 = vsyncpa [#allocation4], 0
    %9 = vsyncpa [#allocation5], 0
    // Predicated region
    $region2: #{tpu_custom_call.1} parent=1 // pred_check
      _
    $region3: #{tpu_custom_call.1} parent=1 // pred_check_branch
      %11 = sbr.rel (0) target = $region5
    $region4: #{tpu_custom_call.1} parent=1 // pred_region
      _
    $region5: #{tpu_custom_call.1} parent=1 // pred_fallthru
      _
    // Predicated region
    $region6: #{tpu_custom_call.1} parent=1 // pred_check
      _
    $region7: #{tpu_custom_call.1} parent=1 // pred_check_branch
      %13 = sbr.rel (0) target = $region9
    $region8: #{tpu_custom_call.1} parent=1 // pred_region
      %s15 = ssub.s32 1024, 1024
      %16 = vsyncadd [#allocation4], %s15
      %s18 = sshll.u32 [#allocation3], 4
      %s19 = int_to_ptr.vmem [resolvable:$true] %s18
      %21 = dma.hbm_to_vmem [thread:$0]  %s1, 1024, %s19, [#allocation4]
    $region9: #{tpu_custom_call.1} parent=1 // pred_fallthru
      _
    // Predicated region
    $region10: #{tpu_custom_call.1} parent=1 // pred_check
      _
    $region11: #{tpu_custom_call.1} parent=1 // pred_check_branch
      %23 = sbr.rel (0) target = $region13
    $region12: #{tpu_custom_call.1} parent=1 // pred_region
      %24 = dma.done [#allocation4], 1024
    $region13: #{tpu_custom_call.1} parent=1 // pred_fallthru
      _
    %s25 = sld [smem:[#allocation2]]
    %v26 = vld [vmem:[#allocation3] sm:$0xff]
    %v27 = vld [vmem:[#allocation3 + $0x8] sm:$0xff]
    %v28 = vld [vmem:[#allocation3 + $0x10] sm:$0xff]
    %v29 = vld [vmem:[#allocation3 + $0x18] sm:$0xff]
    %v30 = vld [vmem:[#allocation3 + $0x20] sm:$0xff]
    %v31 = vld [vmem:[#allocation3 + $0x28] sm:$0xff]
    %v32 = vld [vmem:[#allocation3 + $0x30] sm:$0xff]
    %v33 = vld [vmem:[#allocation3 + $0x38] sm:$0xff]
    %v34 = vstv %s25
    %v35 = vmul.f32 %v26, %v34
    %v36 = vmul.f32 %v27, %v34
    %v37 = vmul.f32 %v28, %v34
    %v38 = vmul.f32 %v29, %v34
    %v39 = vmul.f32 %v30, %v34
    %v40 = vmul.f32 %v31, %v34
    %v41 = vmul.f32 %v32, %v34
    %v42 = vmul.f32 %v33, %v34
    %43 = vst [vmem:[#allocation6] sm:$0xff] %v35
    %44 = vst [vmem:[#allocation6 + $0x8] sm:$0xff] %v36
    %45 = vst [vmem:[#allocation6 + $0x10] sm:$0xff] %v37
    %46 = vst [vmem:[#allocation6 + $0x18] sm:$0xff] %v38
    %47 = vst [vmem:[#allocation6 + $0x20] sm:$0xff] %v39
    %48 = vst [vmem:[#allocation6 + $0x28] sm:$0xff] %v40
    %49 = vst [vmem:[#allocation6 + $0x30] sm:$0xff] %v41
    %50 = vst [vmem:[#allocation6 + $0x38] sm:$0xff] %v42
    // Predicated region
    $region14: #{tpu_custom_call.1} parent=1 // pred_check
      _
    $region15: #{tpu_custom_call.1} parent=1 // pred_check_branch
      %52 = sbr.rel (0) target = $region17
    $region16: #{tpu_custom_call.1} parent=1 // pred_region
      %s54 = ssub.s32 1024, 1024
      %55 = vsyncadd [#allocation5], %s54
      %s57 = sshll.u32 [#allocation6], 4
      %s58 = int_to_ptr.vmem [resolvable:$true] %s57
      %60 = dma.vmem_to_hbm [thread:$0]  %s58, 1024, %s2, [#allocation5]
    $region17: #{tpu_custom_call.1} parent=1 // pred_fallthru
      _
    // Predicated region
    $region18: #{tpu_custom_call.1} parent=1 // pred_check
      _
    $region19: #{tpu_custom_call.1} parent=1 // pred_check_branch
      %62 = sbr.rel (0) target = $region21
    $region20: #{tpu_custom_call.1} parent=1 // pred_region
      %63 = dma.done [#allocation5], 1024
    $region21: #{tpu_custom_call.1} parent=1 // pred_fallthru
      _
    %64 = vsyncpa [#allocation4], 1
    %65 = vsyncpa [#allocation5], 1

</llo_original>
